<compile_context>
chip_gen: v7x
topology: tpu7x:2x2x1
jax: 0.10.0
libtpu: 0.0.40
codegen_flags: <defaults>
</compile_context>

<pallas_src>
import functools
import math

import jax
import jax.numpy as jnp
from jax.experimental import pallas as pl
from jax.experimental.pallas import tpu as pltpu


# ----------------------------- dense (Linear) --------------------------------

def _dense_kernel(x_ref, w_ref, b_ref, o_ref):
    # x: (tm, D) bf16, w: (D, tn) bf16, b: (1, tn) f32 -> o: (tm, tn)
    y = jnp.dot(x_ref[...], w_ref[...], preferred_element_type=jnp.float32)
    o_ref[...] = (y + b_ref[...]).astype(o_ref.dtype)


def dense(x, w, b, *, out_dtype, row_tile=256, n_tile=None,
          vmem_limit=32 * 1024 * 1024):
    """x: (R, D) bf16, w: (D, N) bf16, b: (N,) f32 -> (R, N) out_dtype."""
    R, D = x.shape
    _, N = w.shape
    tm = min(row_tile, R)
    assert R % tm == 0, "rows must divide row tile"
    tn = N if n_tile is None else min(n_tile, N)
    assert N % tn == 0, "N must divide n tile"

    return pl.pallas_call(
        _dense_kernel,
        out_shape=jax.ShapeDtypeStruct((R, N), out_dtype),
        grid_spec=pltpu.PrefetchScalarGridSpec(
            num_scalar_prefetch=0,
            grid=(R // tm, N // tn),
            in_specs=[
                pl.BlockSpec((tm, D), lambda i, j: (i, 0)),   # activations
                pl.BlockSpec((D, tn), lambda i, j: (0, j)),   # weight (resident if tn == N)
                pl.BlockSpec((1, tn), lambda i, j: (0, j)),   # bias
            ],
            out_specs=pl.BlockSpec((tm, tn), lambda i, j: (i, j)),
        ),
        compiler_params=pltpu.CompilerParams(
            dimension_semantics=("parallel", "parallel"),
            vmem_limit_bytes=vmem_limit,
        ),
    )(x, w, b.reshape(1, N))


# --------------------------- flash attention ---------------------------------

def _flash_kernel(q_ref, k_ref, v_ref, o_ref, m_sc, l_sc, acc_sc, *, single_kv):
    # q_ref: (1, H, tq, h) bf16 ; k_ref/v_ref: (1, H, tk, h) bf16
    # o_ref: (1, tq, H*h) bf16  (lane-dense)
    H = q_ref.shape[1]
    hdim = q_ref.shape[3]

    q = q_ref[0]                                   # (H, tq, h)
    k = k_ref[0]                                   # (H, tk, h)
    v = v_ref[0]                                   # (H, tk, h)

    # Scale already folded into Wq/bq; contraction on last dims (no K transpose).
    s = jnp.einsum("hqd,hkd->hqk", q, k,
                   preferred_element_type=jnp.float32)          # (H, tq, tk) f32

    def write_out(acc, l):
        inv_l = pl.reciprocal(l, approx=True)                   # EUP slot, ~free
        out = acc * inv_l                                        # (H, tq, h) f32
        for hd in range(H):                                      # static column stores
            o_ref[0, :, hd * hdim:(hd + 1) * hdim] = out[hd].astype(o_ref.dtype)

    if single_kv:
        # Fast path: one kv tile -> exact softmax, no online-rescale carries.
        m = jnp.max(s, axis=-1, keepdims=True)
        p = jnp.exp(s - m)
        l = jnp.sum(p, axis=-1, keepdims=True)
        acc = jnp.einsum("hqk,hkd->hqd", p.astype(v.dtype), v,
                         preferred_element_type=jnp.float32)
        write_out(acc, l)
    else:
        kv = pl.program_id(2)

        @pl.when(kv == 0)
        def _():
            m_sc[...] = jnp.full_like(m_sc, -jnp.inf)
            l_sc[...] = jnp.zeros_like(l_sc)
            acc_sc[...] = jnp.zeros_like(acc_sc)

        m_prev = m_sc[...]
        m_new = jnp.maximum(m_prev, jnp.max(s, axis=-1, keepdims=True))
        alpha = jnp.exp(m_prev - m_new)
        p = jnp.exp(s - m_new)
        l_sc[...] = alpha * l_sc[...] + jnp.sum(p, axis=-1, keepdims=True)
        acc_sc[...] = alpha * acc_sc[...] + jnp.einsum(
            "hqk,hkd->hqd", p.astype(v.dtype), v,
            preferred_element_type=jnp.float32)
        m_sc[...] = m_new

        @pl.when(kv == pl.num_programs(2) - 1)
        def _():
            write_out(acc_sc[...], l_sc[...])


def flash_attention(q, k, v, *, q_tile=128, kv_tile=128,
                    vmem_limit=32 * 1024 * 1024):
    """q: (B, H, Sq, h), k/v: (B, H, Sk, h) bf16 -> (B, Sq, H*h) bf16."""
    B, H, Sq, h = q.shape
    Sk = k.shape[2]
    D = H * h
    tq = min(q_tile, Sq)
    tk = min(kv_tile, Sk)
    assert Sq % tq == 0 and Sk % tk == 0
    num_kv = Sk // tk

    kernel = functools.partial(_flash_kernel, single_kv=(num_kv == 1))
    return pl.pallas_call(
        kernel,
        out_shape=jax.ShapeDtypeStruct((B, Sq, D), q.dtype),
        grid_spec=pltpu.PrefetchScalarGridSpec(
            num_scalar_prefetch=0,
            grid=(B, Sq // tq, num_kv),
            in_specs=[
                pl.BlockSpec((1, H, tq, h), lambda b, i, j: (b, 0, i, 0)),  # q
                pl.BlockSpec((1, H, tk, h), lambda b, i, j: (b, 0, j, 0)),  # k
                pl.BlockSpec((1, H, tk, h), lambda b, i, j: (b, 0, j, 0)),  # v
            ],
            out_specs=pl.BlockSpec((1, tq, D), lambda b, i, j: (b, i, 0)),   # lane-dense
            scratch_shapes=[
                pltpu.VMEM((H, tq, 1), jnp.float32),    # running max
                pltpu.VMEM((H, tq, 1), jnp.float32),    # running denom
                pltpu.VMEM((H, tq, h), jnp.float32),    # f32 accumulator
            ],
        ),
        compiler_params=pltpu.CompilerParams(
            dimension_semantics=("parallel", "parallel", "arbitrary"),
            vmem_limit_bytes=vmem_limit,
        ),
    )(q, k, v)


# ------------------------------ MHA wrapper -----------------------------------

def multi_head_attention(q, k, v, params, *, num_head, row_tile=256,
                         q_tile=128, kv_tile=128):
    """q/k/v: (B, S, D) f32.  params: wq/bq/wk/bk/wv/bv/wo/bo."""
    B, Sq, D = q.shape
    Sk = k.shape[1]
    assert D % num_head == 0
    h = D // num_head
    out_dtype = q.dtype
    scale = 1.0 / math.sqrt(h)

    # Fold softmax scale into the Q projection (free at trace time).
    wq = params["wq"] * scale
    bq = params["bq"] * scale

    bf16 = lambda a: a.astype(jnp.bfloat16)
    to2 = lambda x: x.reshape(-1, D).astype(jnp.bfloat16)

    if (q is k) and (q is v):
        # Self-attention: fused QKV GEMM (single kernel, x read once, 3x wider N).
        w_qkv = jnp.concatenate([wq, params["wk"], params["wv"]], axis=1)
        b_qkv = jnp.concatenate([bq, params["bk"], params["bv"]], axis=0)
        qkv = dense(to2(q), bf16(w_qkv), b_qkv,
                    out_dtype=jnp.bfloat16, row_tile=row_tile)
        qp, kp, vp = qkv[:, :D], qkv[:, D:2 * D], qkv[:, 2 * D:]
    else:
        qp = dense(to2(q), bf16(wq), bq, out_dtype=jnp.bfloat16, row_tile=row_tile)
        kp = dense(to2(k), bf16(params["wk"]), params["bk"],
                   out_dtype=jnp.bfloat16, row_tile=row_tile)
        vp = dense(to2(v), bf16(params["wv"]), params["bv"],
                   out_dtype=jnp.bfloat16, row_tile=row_tile)

    def split_heads(x, s_len):
        return (x.reshape(B, s_len, num_head, h).transpose(0, 2, 1, 3))

    # Attention kernel emits the (B, Sq, D) merged layout directly (lane-dense),
    # so no merge transpose is needed before the output projection.
    attn = flash_attention(split_heads(qp, Sq), split_heads(kp, Sk),
                           split_heads(vp, Sk), q_tile=q_tile, kv_tile=kv_tile)

    out = dense(attn.reshape(B * Sq, D), bf16(params["wo"]), params["bo"],
                out_dtype=out_dtype, row_tile=row_tile)
    return out.reshape(B, Sq, D)


# ------------------------------ pure-JAX ref ----------------------------------

def _reference_mha(q, k, v, params, *, num_head):
    B, S, D = q.shape
    h = D // num_head

    def dense_ref(x, w, b):
        y = jnp.dot(x.astype(jnp.bfloat16), w.astype(jnp.bfloat16),
                    preferred_element_type=jnp.float32)
        return y + b.astype(jnp.float32)

    qp = dense_ref(q.reshape(B * S, D), params["wq"], params["bq"])
    kp = dense_ref(k.reshape(B * S, D), params["wk"], params["bk"])
    vp = dense_ref(v.reshape(B * S, D), params["wv"], params["bv"])

    def split(x):
        return x.reshape(B, S, num_head, h).transpose(0, 2, 1, 3)

    qh = split(qp).astype(jnp.bfloat16)
    kh = split(kp).astype(jnp.bfloat16)
    vh = split(vp).astype(jnp.bfloat16)

    s = jnp.einsum("bhqd,bhkd->bhqk", qh, kh,
                   preferred_element_type=jnp.float32) / math.sqrt(h)
    p = jax.nn.softmax(s, axis=-1)
    o = jnp.einsum("bhqk,bhkd->bhqd", p.astype(jnp.bfloat16), vh,
                   preferred_element_type=jnp.float32)
    o = o.transpose(0, 2, 1, 3).reshape(B * S, D)
    out = dense_ref(o, params["wo"], params["bo"])
    return out.reshape(B, S, D).astype(q.dtype)


if __name__ == "__main__":
    key = jax.random.PRNGKey(0)
    # Small but lane-dense shapes: d_model multiple of 128.
    B, S, D, H = 2, 128, 128, 4

    keys = jax.random.split(key, 9)
    x = jax.random.normal(keys[0], (B, S, D), dtype=jnp.float32)

    def init_linear(kw, kb, d_in, d_out):
        w = jax.random.normal(kw, (d_in, d_out), dtype=jnp.float32) / math.sqrt(d_in)
        b = jax.random.normal(kb, (d_out,), dtype=jnp.float32) * 0.02
        return w, b

    wq, bq = init_linear(keys[1], keys[2], D, D)
    wk, bk = init_linear(keys[3], keys[4], D, D)
    wv, bv = init_linear(keys[5], keys[6], D, D)
    wo, bo = init_linear(keys[7], keys[8], D, D)
    params = dict(wq=wq, bq=bq, wk=wk, bk=bk, wv=wv, bv=bv, wo=wo, bo=bo)

    # Self-attention style call (q = k = v), as in a BERT encoder block.
    out = multi_head_attention(x, x, x, params, num_head=H)
    out = jax.block_until_ready(out)

    ref = _reference_mha(x, x, x, params, num_head=H)
    assert out.shape == (B, S, D)
    max_err = float(jnp.max(jnp.abs(out - ref)))
    assert jnp.allclose(out, ref, atol=2e-2, rtol=2e-2), (
        f"mismatch vs reference (max abs err = {max_err})")

    print("KERNEL_OK")
</pallas_src>

<mosaic_0001>
module attributes {stable_mosaic.version = 11 : i64} {
  func.func @_dense_kernel(%arg0: i32, %arg1: i32, %arg2: memref<256x128xbf16, #tpu.memory_space<vmem>>, %arg3: memref<128x384xbf16, #tpu.memory_space<vmem>>, %arg4: memref<1x384xf32, #tpu.memory_space<vmem>>, %arg5: memref<256x384xbf16, #tpu.memory_space<vmem>>) attributes {dimension_semantics = [#tpu.dimension_semantics<parallel>, #tpu.dimension_semantics<parallel>], iteration_bounds = array<i64: 1, 1>, scalar_prefetch = 0 : i64, scratch_operands = 0 : i64, tpu.core_type = #tpu.core_type<tc>, window_params = [{transform_indices = @transform_0, window_bounds = array<i64: 256, 128>}, {transform_indices = @transform_1, window_bounds = array<i64: 128, 384>}, {transform_indices = @transform_2, window_bounds = array<i64: 1, 384>}, {transform_indices = @transform_3, window_bounds = array<i64: 256, 384>}]} {
    %c0 = arith.constant 0 : index
    %c0_0 = arith.constant 0 : index
    %0 = vector.load %arg2[%c0, %c0_0] : memref<256x128xbf16, #tpu.memory_space<vmem>>, vector<256x128xbf16>
    %c0_1 = arith.constant 0 : index
    %c0_2 = arith.constant 0 : index
    %1 = vector.load %arg3[%c0_1, %c0_2] : memref<128x384xbf16, #tpu.memory_space<vmem>>, vector<128x384xbf16>
    %cst = arith.constant dense<0.000000e+00> : vector<256x384xf32>
    %2 = tpu.matmul %0, %1, %cst {dimension_numbers = #tpu.dot_dimension_numbers<[1], [0], [0], [1], [0, 0, 1, 1], [], []>} : vector<256x128xbf16>, vector<128x384xbf16>, vector<256x384xf32> -> vector<256x384xf32>
    %c0_3 = arith.constant 0 : index
    %c0_4 = arith.constant 0 : index
    %3 = vector.load %arg4[%c0_3, %c0_4] : memref<1x384xf32, #tpu.memory_space<vmem>>, vector<1x384xf32>
    %4 = vector.broadcast %3 : vector<1x384xf32> to vector<256x384xf32>
    %5 = arith.addf %2, %4 : vector<256x384xf32>
    %6 = arith.truncf %5 : vector<256x384xf32> to vector<256x384xbf16>
    %c0_5 = arith.constant 0 : index
    %c0_6 = arith.constant 0 : index
    %7 = vector.load %arg5[%c0_5, %c0_6] : memref<256x384xbf16, #tpu.memory_space<vmem>>, vector<256x384xbf16>
    tpu.vector_store %arg5[%c0_5, %c0_6], %6 {strides = array<i32>} : memref<256x384xbf16, #tpu.memory_space<vmem>>, vector<256x384xbf16>,
    return
  }
  func.func @transform_0(%arg0: i32, %arg1: i32) -> (i32, i32) {
    %c0_i32 = arith.constant 0 : i32
    %c0_i32_0 = arith.constant 0 : i32
    return %arg0, %c0_i32 : i32, i32
  }
  func.func @transform_1(%arg0: i32, %arg1: i32) -> (i32, i32) {
    %c0_i32 = arith.constant 0 : i32
    %c0_i32_0 = arith.constant 0 : i32
    return %c0_i32, %arg1 : i32, i32
  }
  func.func @transform_2(%arg0: i32, %arg1: i32) -> (i32, i32) {
    %c0_i32 = arith.constant 0 : i32
    %c0_i32_0 = arith.constant 0 : i32
    return %c0_i32, %arg1 : i32, i32
  }
  func.func @transform_3(%arg0: i32, %arg1: i32) -> (i32, i32) {
    %c0_i32 = arith.constant 0 : i32
    return %arg0, %arg1 : i32, i32
  }
}

</mosaic_0001>

<llo_original>
// kernel: tpu_custom_call.1
$region0: #{tpu_custom_call.1}
  #allocation0 [shape = 'u32[]', space=smem, size = 0x4, offset = 0x4, fixed_abs, tag = 'smem constant byte address 0x4 - core index']
  #allocation1 [shape = 'u32[144,128]{1,0:T(1,128)}', space=vmem, size = 0x12000, scoped, tag = 'internal scratch']
  %s0 = inlined_call_operand.hbm [shape: bf16[256,128], index: 0, kind: input, shape index: {}]
  %s1 = inlined_call_operand.hbm [shape: bf16[128,384], index: 1, kind: input, shape index: {}]
  %s2 = inlined_call_operand.vmem [shape: f32[1,384], index: 2, kind: input, shape index: {}]
  %s3 = inlined_call_operand.hbm [shape: bf16[256,384], index: 3, kind: output, shape index: {}]
  %s4 = sld [smem:[#allocation0]]
  $region30: #{tpu_custom_call.1} parent=0
    _
  %s6 = ssub.s32 1, %s4
  %s7 = scalar_select 0, %s6, %s4
  $region1: #{tpu_custom_call.1} parent=0
    #allocation2 [shape = 'u8[65536]{0}', space=vmem, size = 0x10000, scoped, tag = 'input window, operand 0, single buffered']
    #allocation3 [shape = 's32[1]{0}', space=sflag, size = 0x4, scoped, tag = 'scoped memory for tpu_custom_call.1']
    #allocation4 [shape = 's32[1]{0}', space=sflag, size = 0x4, scoped, tag = 'scoped memory for tpu_custom_call.1']
    #allocation5 [shape = 'u8[98304]{0}', space=vmem, size = 0x18000, scoped, tag = 'input window, operand 1, single buffered']
    #allocation6 [shape = 's32[1]{0}', space=sflag, size = 0x4, scoped, tag = 'scoped memory for tpu_custom_call.1']
    #allocation7 [shape = 'u8[196608]{0}', space=vmem, size = 0x30000, scoped, tag = 'output window, operand 0, single buffered']
    %8 = vsyncpa [#allocation3], 0
    %9 = vsyncpa [#allocation6], 0
    %10 = vsyncpa [#allocation4], 0
    // Predicated region
    $region2: #{tpu_custom_call.1} parent=1 // pred_check
      _
    $region3: #{tpu_custom_call.1} parent=1 // pred_check_branch
      %12 = sbr.rel (0) target = $region5
    $region4: #{tpu_custom_call.1} parent=1 // pred_region
      %s14 = ssub.s32 2048, 2048
      %15 = vsyncadd [#allocation3], %s14
      %s16 = sshll.u32 [#allocation2], 4
      %s17 = int_to_ptr.vmem [resolvable:$true] %s16
      %22 = dma.hbm_to_vmem [thread:$0]  %s0, 2048, %s17, [#allocation3], 64, 64, 4
    $region5: #{tpu_custom_call.1} parent=1 // pred_fallthru
      _
    // Predicated region
    $region6: #{tpu_custom_call.1} parent=1 // pred_check
      _
    $region7: #{tpu_custom_call.1} parent=1 // pred_check_branch
      %24 = sbr.rel (0) target = $region9
    $region8: #{tpu_custom_call.1} parent=1 // pred_region
      %s26 = ssub.s32 3072, 3072
      %27 = vsyncadd [#allocation6], %s26
      %s28 = sshll.u32 [#allocation5], 4
      %s29 = int_to_ptr.vmem [resolvable:$true] %s28
      %34 = dma.hbm_to_vmem [thread:$0]  %s1, 3072, %s29, [#allocation6], 192, 192, 12
    $region9: #{tpu_custom_call.1} parent=1 // pred_fallthru
      _
    // Predicated region
    $region10: #{tpu_custom_call.1} parent=1 // pred_check
      _
    $region11: #{tpu_custom_call.1} parent=1 // pred_check_branch
      %36 = sbr.rel (0) target = $region13
    $region12: #{tpu_custom_call.1} parent=1 // pred_region
      _
    $region13: #{tpu_custom_call.1} parent=1 // pred_fallthru
      _
    // Predicated region
    $region14: #{tpu_custom_call.1} parent=1 // pred_check
      _
    $region15: #{tpu_custom_call.1} parent=1 // pred_check_branch
      %38 = sbr.rel (0) target = $region17
    $region16: #{tpu_custom_call.1} parent=1 // pred_region
      %39 = dma.done [#allocation3], 2048
    $region17: #{tpu_custom_call.1} parent=1 // pred_fallthru
      _
    // Predicated region
    $region18: #{tpu_custom_call.1} parent=1 // pred_check
      _
    $region19: #{tpu_custom_call.1} parent=1 // pred_check_branch
      %41 = sbr.rel (0) target = $region21
    $region20: #{tpu_custom_call.1} parent=1 // pred_region
      %42 = dma.done [#allocation6], 3072
    $region21: #{tpu_custom_call.1} parent=1 // pred_fallthru
      _
    %v44 = vld [vmem:[#allocation2] sm:$0xf]
    %v45 = vld [vmem:[#allocation2 + $0x4] sm:$0xf]
    %v46 = vld [vmem:[#allocation2 + $0x8] sm:$0xf]
    %v47 = vld [vmem:[#allocation2 + $0xc] sm:$0xf]
    %v48 = vld [vmem:[#allocation2 + $0x10] sm:$0xf]
    %v49 = vld [vmem:[#allocation2 + $0x14] sm:$0xf]
    %v50 = vld [vmem:[#allocation2 + $0x18] sm:$0xf]
    %v51 = vld [vmem:[#allocation2 + $0x1c] sm:$0xf]
    %v52 = vld [vmem:[#allocation2 + $0x20] sm:$0xf]
    %v53 = vld [vmem:[#allocation2 + $0x24] sm:$0xf]
    %v54 = vld [vmem:[#allocation2 + $0x28] sm:$0xf]
    %v55 = vld [vmem:[#allocation2 + $0x2c] sm:$0xf]
    %v56 = vld [vmem:[#allocation2 + $0x30] sm:$0xf]
    %v57 = vld [vmem:[#allocation2 + $0x34] sm:$0xf]
    %v58 = vld [vmem:[#allocation2 + $0x38] sm:$0xf]
    %v59 = vld [vmem:[#allocation2 + $0x3c] sm:$0xf]
    %v60 = vld [vmem:[#allocation2 + $0x40] sm:$0xf]
    %v61 = vld [vmem:[#allocation2 + $0x44] sm:$0xf]
    %v62 = vld [vmem:[#allocation2 + $0x48] sm:$0xf]
    %v63 = vld [vmem:[#allocation2 + $0x4c] sm:$0xf]
    %v64 = vld [vmem:[#allocation2 + $0x50] sm:$0xf]
    %v65 = vld [vmem:[#allocation2 + $0x54] sm:$0xf]
    %v66 = vld [vmem:[#allocation2 + $0x58] sm:$0xf]
    %v67 = vld [vmem:[#allocation2 + $0x5c] sm:$0xf]
    %v68 = vld [vmem:[#allocation2 + $0x60] sm:$0xf]
    %v69 = vld [vmem:[#allocation2 + $0x64] sm:$0xf]
    %v70 = vld [vmem:[#allocation2 + $0x68] sm:$0xf]
    %v71 = vld [vmem:[#allocation2 + $0x6c] sm:$0xf]
    %v72 = vld [vmem:[#allocation2 + $0x70] sm:$0xf]
    %v73 = vld [vmem:[#allocation2 + $0x74] sm:$0xf]
    %v74 = vld [vmem:[#allocation2 + $0x78] sm:$0xf]
    %v75 = vld [vmem:[#allocation2 + $0x7c] sm:$0xf]
    %v76 = vld [vmem:[#allocation5] sm:$0xff]
    %v77 = vld [vmem:[#allocation5 + $0x8] sm:$0xf]
    %v78 = vld [vmem:[#allocation5 + $0xc] sm:$0xff]
    %v79 = vld [vmem:[#allocation5 + $0x14] sm:$0xf]
    %v80 = vld [vmem:[#allocation5 + $0x18] sm:$0xff]
    %v81 = vld [vmem:[#allocation5 + $0x20] sm:$0xf]
    %v82 = vld [vmem:[#allocation5 + $0x24] sm:$0xff]
    %v83 = vld [vmem:[#allocation5 + $0x2c] sm:$0xf]
    %v84 = vld [vmem:[#allocation5 + $0x30] sm:$0xff]
    %v85 = vld [vmem:[#allocation5 + $0x38] sm:$0xf]
    %v86 = vld [vmem:[#allocation5 + $0x3c] sm:$0xff]
    %v87 = vld [vmem:[#allocation5 + $0x44] sm:$0xf]
    %v88 = vld [vmem:[#allocation5 + $0x48] sm:$0xff]
    %v89 = vld [vmem:[#allocation5 + $0x50] sm:$0xf]
    %v90 = vld [vmem:[#allocation5 + $0x54] sm:$0xff]
    %v91 = vld [vmem:[#allocation5 + $0x5c] sm:$0xf]
    %v92 = vld [vmem:[#allocation5 + $0x60] sm:$0xff]
    %v93 = vld [vmem:[#allocation5 + $0x68] sm:$0xf]
    %v94 = vld [vmem:[#allocation5 + $0x6c] sm:$0xff]
    %v95 = vld [vmem:[#allocation5 + $0x74] sm:$0xf]
    %v96 = vld [vmem:[#allocation5 + $0x78] sm:$0xff]
    %v97 = vld [vmem:[#allocation5 + $0x80] sm:$0xf]
    %v98 = vld [vmem:[#allocation5 + $0x84] sm:$0xff]
    %v99 = vld [vmem:[#allocation5 + $0x8c] sm:$0xf]
    %v100 = vld [vmem:[#allocation5 + $0x90] sm:$0xff]
    %v101 = vld [vmem:[#allocation5 + $0x98] sm:$0xf]
    %v102 = vld [vmem:[#allocation5 + $0x9c] sm:$0xff]
    %v103 = vld [vmem:[#allocation5 + $0xa4] sm:$0xf]
    %v104 = vld [vmem:[#allocation5 + $0xa8] sm:$0xff]
    %v105 = vld [vmem:[#allocation5 + $0xb0] sm:$0xf]
    %v106 = vld [vmem:[#allocation5 + $0xb4] sm:$0xff]
    %v107 = vld [vmem:[#allocation5 + $0xbc] sm:$0xf]
    %v108 = vld [vmem:[%s2] sm:$0x7]
    %v110 = vlaneseq
    %v111 = vshrl.u32 %v110, 7
    %v112 = vsub.s32 0, %v111
    %v113 = vrot.slane %v108, %v112
    %v114 = vlaneseq
    %v115 = vshrl.u32 %v114, 7
    %v116 = vsub.s32 1, %v115
    %v117 = vrot.slane %v108, %v116
    %v118 = vlaneseq
    %v119 = vshrl.u32 %v118, 7
    %v120 = vsub.s32 2, %v119
    %v121 = vrot.slane %v108, %v120
    %v157 = vunpack.c.l.b16 %v44
    %v158 = vunpack.c.l.b16 %v45
    %v159 = vunpack.c.l.b16 %v46
    %v160 = vunpack.c.l.b16 %v47
    %v161 = vunpack.c.l.b16 %v48
    %v162 = vunpack.c.l.b16 %v49
    %v163 = vunpack.c.l.b16 %v50
    %v164 = vunpack.c.l.b16 %v51
    %v165 = vunpack.c.l.b16 %v52
    %v166 = vunpack.c.l.b16 %v53
    %v167 = vunpack.c.l.b16 %v54
    %v168 = vunpack.c.l.b16 %v55
    %v169 = vunpack.c.l.b16 %v56
    %v170 = vunpack.c.l.b16 %v57
    %v171 = vunpack.c.l.b16 %v58
    %v172 = vunpack.c.l.b16 %v59
    %v173 = vunpack.c.l.b16 %v60
    %v174 = vunpack.c.l.b16 %v61
    %v175 = vunpack.c.l.b16 %v62
    %v176 = vunpack.c.l.b16 %v63
    %v177 = vunpack.c.l.b16 %v64
    %v178 = vunpack.c.l.b16 %v65
    %v179 = vunpack.c.l.b16 %v66
    %v180 = vunpack.c.l.b16 %v67
    %v181 = vunpack.c.l.b16 %v68
    %v182 = vunpack.c.l.b16 %v69
    %v183 = vunpack.c.l.b16 %v70
    %v184 = vunpack.c.l.b16 %v71
    %v185 = vunpack.c.l.b16 %v72
    %v186 = vunpack.c.l.b16 %v73
    %v187 = vunpack.c.l.b16 %v74
    %v188 = vunpack.c.l.b16 %v75
    %v189 = vpack.c.b16 %v158, %v157
    %v190 = vpack.c.b16 %v160, %v159
    %v191 = vpack.c.b16 %v162, %v161
    %v192 = vpack.c.b16 %v164, %v163
    %v193 = vpack.c.b16 %v166, %v165
    %v194 = vpack.c.b16 %v168, %v167
    %v195 = vpack.c.b16 %v170, %v169
    %v196 = vpack.c.b16 %v172, %v171
    %v197 = vpack.c.b16 %v174, %v173
    %v198 = vpack.c.b16 %v176, %v175
    %v199 = vpack.c.b16 %v178, %v177
    %v200 = vpack.c.b16 %v180, %v179
    %v201 = vpack.c.b16 %v182, %v181
    %v202 = vpack.c.b16 %v184, %v183
    %v203 = vpack.c.b16 %v186, %v185
    %v204 = vpack.c.b16 %v188, %v187
    %v253 = vunpack.c.l.b16 %v76
    %v254 = vunpack.c.h.b16 %v76
    %v255 = vunpack.c.l.b16 %v77
    %v256 = vunpack.c.l.b16 %v78
    %v257 = vunpack.c.h.b16 %v78
    %v258 = vunpack.c.l.b16 %v79
    %v259 = vunpack.c.l.b16 %v80
    %v260 = vunpack.c.h.b16 %v80
    %v261 = vunpack.c.l.b16 %v81
    %v262 = vunpack.c.l.b16 %v82
    %v263 = vunpack.c.h.b16 %v82
    %v264 = vunpack.c.l.b16 %v83
    %v265 = vunpack.c.l.b16 %v84
    %v266 = vunpack.c.h.b16 %v84
    %v267 = vunpack.c.l.b16 %v85
    %v268 = vunpack.c.l.b16 %v86
    %v269 = vunpack.c.h.b16 %v86
    %v270 = vunpack.c.l.b16 %v87
    %v271 = vunpack.c.l.b16 %v88
    %v272 = vunpack.c.h.b16 %v88
    %v273 = vunpack.c.l.b16 %v89
    %v274 = vunpack.c.l.b16 %v90
    %v275 = vunpack.c.h.b16 %v90
    %v276 = vunpack.c.l.b16 %v91
    %v277 = vunpack.c.l.b16 %v92
    %v278 = vunpack.c.h.b16 %v92
    %v279 = vunpack.c.l.b16 %v93
    %v280 = vunpack.c.l.b16 %v94
    %v281 = vunpack.c.h.b16 %v94
    %v282 = vunpack.c.l.b16 %v95
    %v283 = vunpack.c.l.b16 %v96
    %v284 = vunpack.c.h.b16 %v96
    %v285 = vunpack.c.l.b16 %v97
    %v286 = vunpack.c.l.b16 %v98
    %v287 = vunpack.c.h.b16 %v98
    %v288 = vunpack.c.l.b16 %v99
    %v289 = vunpack.c.l.b16 %v100
    %v290 = vunpack.c.h.b16 %v100
    %v291 = vunpack.c.l.b16 %v101
    %v292 = vunpack.c.l.b16 %v102
    %v293 = vunpack.c.h.b16 %v102
    %v294 = vunpack.c.l.b16 %v103
    %v295 = vunpack.c.l.b16 %v104
    %v296 = vunpack.c.h.b16 %v104
    %v297 = vunpack.c.l.b16 %v105
    %v298 = vunpack.c.l.b16 %v106
    %v299 = vunpack.c.h.b16 %v106
    %v300 = vunpack.c.l.b16 %v107
    %v301 = vpack.c.b16 %v256, %v253
    %v302 = vpack.c.b16 %v257, %v254
    %v303 = vpack.c.b16 %v258, %v255
    %v304 = vpack.c.b16 %v262, %v259
    %v305 = vpack.c.b16 %v263, %v260
    %v306 = vpack.c.b16 %v264, %v261
    %v307 = vpack.c.b16 %v268, %v265
    %v308 = vpack.c.b16 %v269, %v266
    %v309 = vpack.c.b16 %v270, %v267
    %v310 = vpack.c.b16 %v274, %v271
    %v311 = vpack.c.b16 %v275, %v272
    %v312 = vpack.c.b16 %v276, %v273
    %v313 = vpack.c.b16 %v280, %v277
    %v314 = vpack.c.b16 %v281, %v278
    %v315 = vpack.c.b16 %v282, %v279
    %v316 = vpack.c.b16 %v286, %v283
    %v317 = vpack.c.b16 %v287, %v284
    %v318 = vpack.c.b16 %v288, %v285
    %v319 = vpack.c.b16 %v292, %v289
    %v320 = vpack.c.b16 %v293, %v290
    %v321 = vpack.c.b16 %v294, %v291
    %v322 = vpack.c.b16 %v298, %v295
    %v323 = vpack.c.b16 %v299, %v296
    %v324 = vpack.c.b16 %v300, %v297
    %349 = vmatprep.subr.bf16.mxu0 %v302
    %350 = vmatpush1.bf16.msra.mxu0 %v301
    %351 = vmatprep.subr.bf16.mxu0 %v305
    %352 = vmatpush1.bf16.msra.mxu0 %v304
    %353 = vmatprep.subr.bf16.mxu0 %v308
    %354 = vmatpush1.bf16.msra.mxu0 %v307
    %355 = vmatprep.subr.bf16.mxu0 %v311
    %356 = vmatpush1.bf16.msra.mxu0 %v310
    %357 = vmatprep.subr.bf16.mxu0 %v314
    %358 = vmatpush1.bf16.msra.mxu0 %v313
    %359 = vmatprep.subr.bf16.mxu0 %v317
    %360 = vmatpush1.bf16.msra.mxu0 %v316
    %361 = vmatprep.subr.bf16.mxu0 %v320
    %362 = vmatpush1.bf16.msra.mxu0 %v319
    %363 = vmatprep.subr.bf16.mxu0 %v323
    %364 = vmatpush1.bf16.msra.mxu0 %v322
    %365 = vmatprep.subr.bf16.mxu0 0
    %366 = vmatpush1.bf16.msra.mxu0 0
    %367 = vmatprep.subr.bf16.mxu0 0
    %368 = vmatpush1.bf16.msra.mxu0 0
    %369 = vmatprep.subr.bf16.mxu0 0
    %370 = vmatpush1.bf16.msra.mxu0 0
    %371 = vmatprep.subr.bf16.mxu0 0
    %372 = vmatpush1.bf16.msra.mxu0 0
    %373 = vmatprep.subr.bf16.mxu0 0
    %374 = vmatpush1.bf16.msra.mxu0 0
    %375 = vmatprep.subr.bf16.mxu0 0
    %376 = vmatpush1.bf16.msra.mxu0 0
    %377 = vmatprep.subr.bf16.mxu0 0
    %378 = vmatpush1.bf16.msra.mxu0 0
    %379 = vmatprep.subr.bf16.mxu0 0
    %380 = vmatpush1.bf16.msra.mxu0 0
    %381 = vmatprep.mubr.bf16.mxu0 0
    %382 = vmatmul.mubr.bf16.gmra.mrb[0].mxu0 %v189
    %v383 = vpop.f32.mrb[0].mxu0
    %v384 = vadd.f32 %v113, %v383
    %v385 = vpop.f32.mrb[0].mxu0
    %v386 = vadd.f32 %v117, %v385
    %v387 = vpop.f32.mrb[0].mxu0
    %v388 = vadd.f32 %v113, %v387
    %v389 = vpop.f32.mrb[0].mxu0
    %v390 = vadd.f32 %v117, %v389
    %391 = vmatprep.mubr.bf16.mxu0 0
    %392 = vmatmul.mubr.bf16.gmra.mrb[0].mxu0 %v190
    %v393 = vpop.f32.mrb[0].mxu0
    %v394 = vadd.f32 %v113, %v393
    %v395 = vpop.f32.mrb[0].mxu0
    %v396 = vadd.f32 %v117, %v395
    %v397 = vpop.f32.mrb[0].mxu0
    %v398 = vadd.f32 %v113, %v397
    %v399 = vpop.f32.mrb[0].mxu0
    %v400 = vadd.f32 %v117, %v399
    %401 = vmatprep.mubr.bf16.mxu0 0
    %402 = vmatmul.mubr.bf16.gmra.mrb[0].mxu0 %v191
    %v403 = vpop.f32.mrb[0].mxu0
    %v404 = vadd.f32 %v113, %v403
    %v405 = vpop.f32.mrb[0].mxu0
    %v406 = vadd.f32 %v117, %v405
    %v407 = vpop.f32.mrb[0].mxu0
    %v408 = vadd.f32 %v113, %v407
    %v409 = vpop.f32.mrb[0].mxu0
    %v410 = vadd.f32 %v117, %v409
    %411 = vmatprep.mubr.bf16.mxu0 0
    %412 = vmatmul.mubr.bf16.gmra.mrb[0].mxu0 %v192
    %v413 = vpop.f32.mrb[0].mxu0
    %v414 = vadd.f32 %v113, %v413
    %v415 = vpop.f32.mrb[0].mxu0
    %v416 = vadd.f32 %v117, %v415
    %v417 = vpop.f32.mrb[0].mxu0
    %v418 = vadd.f32 %v113, %v417
    %v419 = vpop.f32.mrb[0].mxu0
    %v420 = vadd.f32 %v117, %v419
    %421 = vmatprep.mubr.bf16.mxu0 0
    %422 = vmatmul.mubr.bf16.gmra.mrb[0].mxu0 %v193
    %v423 = vpop.f32.mrb[0].mxu0
    %v424 = vadd.f32 %v113, %v423
    %v425 = vpop.f32.mrb[0].mxu0
    %v426 = vadd.f32 %v117, %v425
    %v427 = vpop.f32.mrb[0].mxu0
    %v428 = vadd.f32 %v113, %v427
    %v429 = vpop.f32.mrb[0].mxu0
    %v430 = vadd.f32 %v117, %v429
    %431 = vmatprep.mubr.bf16.mxu0 0
    %432 = vmatmul.mubr.bf16.gmra.mrb[0].mxu0 %v194
    %v433 = vpop.f32.mrb[0].mxu0
    %v434 = vadd.f32 %v113, %v433
    %v435 = vpop.f32.mrb[0].mxu0
    %v436 = vadd.f32 %v117, %v435
    %v437 = vpop.f32.mrb[0].mxu0
    %v438 = vadd.f32 %v113, %v437
    %v439 = vpop.f32.mrb[0].mxu0
    %v440 = vadd.f32 %v117, %v439
    %441 = vmatprep.mubr.bf16.mxu0 0
    %442 = vmatmul.mubr.bf16.gmra.mrb[0].mxu0 %v195
    %v443 = vpop.f32.mrb[0].mxu0
    %v444 = vadd.f32 %v113, %v443
    %v445 = vpop.f32.mrb[0].mxu0
    %v446 = vadd.f32 %v117, %v445
    %v447 = vpop.f32.mrb[0].mxu0
    %v448 = vadd.f32 %v113, %v447
    %v449 = vpop.f32.mrb[0].mxu0
    %v450 = vadd.f32 %v117, %v449
    %451 = vmatprep.mubr.bf16.mxu0 0
    %452 = vmatmul.mubr.bf16.gmra.mrb[0].mxu0 %v196
    %v453 = vpop.f32.mrb[0].mxu0
    %v454 = vadd.f32 %v113, %v453
    %v455 = vpop.f32.mrb[0].mxu0
    %v456 = vadd.f32 %v117, %v455
    %v457 = vpop.f32.mrb[0].mxu0
    %v458 = vadd.f32 %v113, %v457
    %v459 = vpop.f32.mrb[0].mxu0
    %v460 = vadd.f32 %v117, %v459
    %461 = vmatprep.mubr.bf16.mxu0 0
    %462 = vmatmul.mubr.bf16.gmra.mrb[0].mxu0 %v197
    %v463 = vpop.f32.mrb[0].mxu0
    %v464 = vadd.f32 %v113, %v463
    %v465 = vpop.f32.mrb[0].mxu0
    %v466 = vadd.f32 %v117, %v465
    %v467 = vpop.f32.mrb[0].mxu0
    %v468 = vadd.f32 %v113, %v467
    %v469 = vpop.f32.mrb[0].mxu0
    %v470 = vadd.f32 %v117, %v469
    %471 = vmatprep.mubr.bf16.mxu0 0
    %472 = vmatmul.mubr.bf16.gmra.mrb[0].mxu0 %v198
    %v473 = vpop.f32.mrb[0].mxu0
    %v474 = vadd.f32 %v113, %v473
    %v475 = vpop.f32.mrb[0].mxu0
    %v476 = vadd.f32 %v117, %v475
    %v477 = vpop.f32.mrb[0].mxu0
    %v478 = vadd.f32 %v113, %v477
    %v479 = vpop.f32.mrb[0].mxu0
    %v480 = vadd.f32 %v117, %v479
    %481 = vmatprep.mubr.bf16.mxu0 0
    %482 = vmatmul.mubr.bf16.gmra.mrb[0].mxu0 %v199
    %v483 = vpop.f32.mrb[0].mxu0
    %v484 = vadd.f32 %v113, %v483
    %v485 = vpop.f32.mrb[0].mxu0
    %v486 = vadd.f32 %v117, %v485
    %v487 = vpop.f32.mrb[0].mxu0
    %v488 = vadd.f32 %v113, %v487
    %v489 = vpop.f32.mrb[0].mxu0
    %v490 = vadd.f32 %v117, %v489
    %491 = vmatprep.mubr.bf16.mxu0 0
    %492 = vmatmul.mubr.bf16.gmra.mrb[0].mxu0 %v200
    %v493 = vpop.f32.mrb[0].mxu0
    %v494 = vadd.f32 %v113, %v493
    %v495 = vpop.f32.mrb[0].mxu0
    %v496 = vadd.f32 %v117, %v495
    %v497 = vpop.f32.mrb[0].mxu0
    %v498 = vadd.f32 %v113, %v497
    %v499 = vpop.f32.mrb[0].mxu0
    %v500 = vadd.f32 %v117, %v499
    %501 = vmatprep.mubr.bf16.mxu0 0
    %502 = vmatmul.mubr.bf16.gmra.mrb[0].mxu0 %v201
    %v503 = vpop.f32.mrb[0].mxu0
    %v504 = vadd.f32 %v113, %v503
    %v505 = vpop.f32.mrb[0].mxu0
    %v506 = vadd.f32 %v117, %v505
    %v507 = vpop.f32.mrb[0].mxu0
    %v508 = vadd.f32 %v113, %v507
    %v509 = vpop.f32.mrb[0].mxu0
    %v510 = vadd.f32 %v117, %v509
    %511 = vmatprep.mubr.bf16.mxu0 0
    %512 = vmatmul.mubr.bf16.gmra.mrb[0].mxu0 %v202
    %v513 = vpop.f32.mrb[0].mxu0
    %v514 = vadd.f32 %v113, %v513
    %v515 = vpop.f32.mrb[0].mxu0
    %v516 = vadd.f32 %v117, %v515
    %v517 = vpop.f32.mrb[0].mxu0
    %v518 = vadd.f32 %v113, %v517
    %v519 = vpop.f32.mrb[0].mxu0
    %v520 = vadd.f32 %v117, %v519
    %521 = vmatprep.mubr.bf16.mxu0 0
    %522 = vmatmul.mubr.bf16.gmra.mrb[0].mxu0 %v203
    %v523 = vpop.f32.mrb[0].mxu0
    %v524 = vadd.f32 %v113, %v523
    %v525 = vpop.f32.mrb[0].mxu0
    %v526 = vadd.f32 %v117, %v525
    %v527 = vpop.f32.mrb[0].mxu0
    %v528 = vadd.f32 %v113, %v527
    %v529 = vpop.f32.mrb[0].mxu0
    %v530 = vadd.f32 %v117, %v529
    %531 = vmatprep.mubr.bf16.mxu0 0
    %532 = vmatmul.mubr.bf16.gmra.mrb[0].mxu0 %v204
    %v533 = vpop.f32.mrb[0].mxu0
    %v534 = vadd.f32 %v113, %v533
    %v535 = vpop.f32.mrb[0].mxu0
    %v536 = vadd.f32 %v117, %v535
    %v537 = vpop.f32.mrb[0].mxu0
    %v538 = vadd.f32 %v113, %v537
    %v539 = vpop.f32.mrb[0].mxu0
    %v540 = vadd.f32 %v117, %v539
    %541 = vdwg.mxu0
    %542 = vmatprep.subr.bf16.mxu0 0
    %543 = vmatpush1.bf16.msra.mxu0 %v303
    %544 = vmatprep.subr.bf16.mxu0 0
    %545 = vmatpush1.bf16.msra.mxu0 %v306
    %546 = vmatprep.subr.bf16.mxu0 0
    %547 = vmatpush1.bf16.msra.mxu0 %v309
    %548 = vmatprep.subr.bf16.mxu0 0
    %549 = vmatpush1.bf16.msra.mxu0 %v312
    %550 = vmatprep.subr.bf16.mxu0 0
    %551 = vmatpush1.bf16.msra.mxu0 %v315
    %552 = vmatprep.subr.bf16.mxu0 0
    %553 = vmatpush1.bf16.msra.mxu0 %v318
    %554 = vmatprep.subr.bf16.mxu0 0
    %555 = vmatpush1.bf16.msra.mxu0 %v321
    %556 = vmatprep.subr.bf16.mxu0 0
    %557 = vmatpush1.bf16.msra.mxu0 %v324
    %558 = vmatprep.subr.bf16.mxu0 0
    %559 = vmatpush1.bf16.msra.mxu0 0
    %560 = vmatprep.subr.bf16.mxu0 0
    %561 = vmatpush1.bf16.msra.mxu0 0
    %562 = vmatprep.subr.bf16.mxu0 0
    %563 = vmatpush1.bf16.msra.mxu0 0
    %564 = vmatprep.subr.bf16.mxu0 0
    %565 = vmatpush1.bf16.msra.mxu0 0
    %566 = vmatprep.subr.bf16.mxu0 0
    %567 = vmatpush1.bf16.msra.mxu0 0
    %568 = vmatprep.subr.bf16.mxu0 0
    %569 = vmatpush1.bf16.msra.mxu0 0
    %570 = vmatprep.subr.bf16.mxu0 0
    %571 = vmatpush1.bf16.msra.mxu0 0
    %572 = vmatprep.subr.bf16.mxu0 0
    %573 = vmatpush1.bf16.msra.mxu0 0
    %574 = vmatprep.mubr.bf16.mxu0 0
    %575 = vmatmul.mubr.bf16.gmra.mrb[0].mxu0 %v189
    %v576 = vpop.f32.mrb[0].mxu0
    %v577 = vadd.f32 %v121, %v576
    %v578 = vpop.f32.mrb[0].mxu0
    %v579 = vpop.f32.mrb[0].mxu0
    %v580 = vadd.f32 %v121, %v579
    %v581 = vpop.f32.mrb[0].mxu0
    %582 = vmatprep.mubr.bf16.mxu0 0
    %583 = vmatmul.mubr.bf16.gmra.mrb[0].mxu0 %v190
    %v584 = vpop.f32.mrb[0].mxu0
    %v585 = vadd.f32 %v121, %v584
    %v586 = vpop.f32.mrb[0].mxu0
    %v587 = vpop.f32.mrb[0].mxu0
    %v588 = vadd.f32 %v121, %v587
    %v589 = vpop.f32.mrb[0].mxu0
    %590 = vmatprep.mubr.bf16.mxu0 0
    %591 = vmatmul.mubr.bf16.gmra.mrb[0].mxu0 %v191
    %v592 = vpop.f32.mrb[0].mxu0
    %v593 = vadd.f32 %v121, %v592
    %v594 = vpop.f32.mrb[0].mxu0
    %v595 = vpop.f32.mrb[0].mxu0
    %v596 = vadd.f32 %v121, %v595
    %v597 = vpop.f32.mrb[0].mxu0
    %598 = vmatprep.mubr.bf16.mxu0 0
    %599 = vmatmul.mubr.bf16.gmra.mrb[0].mxu0 %v192
    %v600 = vpop.f32.mrb[0].mxu0
    %v601 = vadd.f32 %v121, %v600
    %v602 = vpop.f32.mrb[0].mxu0
    %v603 = vpop.f32.mrb[0].mxu0
    %v604 = vadd.f32 %v121, %v603
    %v605 = vpop.f32.mrb[0].mxu0
    %606 = vmatprep.mubr.bf16.mxu0 0
    %607 = vmatmul.mubr.bf16.gmra.mrb[0].mxu0 %v193
    %v608 = vpop.f32.mrb[0].mxu0
    %v609 = vadd.f32 %v121, %v608
    %v610 = vpop.f32.mrb[0].mxu0
    %v611 = vpop.f32.mrb[0].mxu0
    %v612 = vadd.f32 %v121, %v611
    %v613 = vpop.f32.mrb[0].mxu0
    %614 = vmatprep.mubr.bf16.mxu0 0
    %615 = vmatmul.mubr.bf16.gmra.mrb[0].mxu0 %v194
    %v616 = vpop.f32.mrb[0].mxu0
    %v617 = vadd.f32 %v121, %v616
    %v618 = vpop.f32.mrb[0].mxu0
    %v619 = vpop.f32.mrb[0].mxu0
    %v620 = vadd.f32 %v121, %v619
    %v621 = vpop.f32.mrb[0].mxu0
    %622 = vmatprep.mubr.bf16.mxu0 0
    %623 = vmatmul.mubr.bf16.gmra.mrb[0].mxu0 %v195
    %v624 = vpop.f32.mrb[0].mxu0
    %v625 = vadd.f32 %v121, %v624
    %v626 = vpop.f32.mrb[0].mxu0
    %v627 = vpop.f32.mrb[0].mxu0
    %v628 = vadd.f32 %v121, %v627
    %v629 = vpop.f32.mrb[0].mxu0
    %630 = vmatprep.mubr.bf16.mxu0 0
    %631 = vmatmul.mubr.bf16.gmra.mrb[0].mxu0 %v196
    %v632 = vpop.f32.mrb[0].mxu0
    %v633 = vadd.f32 %v121, %v632
    %v634 = vpop.f32.mrb[0].mxu0
    %v635 = vpop.f32.mrb[0].mxu0
    %v636 = vadd.f32 %v121, %v635
    %v637 = vpop.f32.mrb[0].mxu0
    %638 = vmatprep.mubr.bf16.mxu0 0
    %639 = vmatmul.mubr.bf16.gmra.mrb[0].mxu0 %v197
    %v640 = vpop.f32.mrb[0].mxu0
    %v641 = vadd.f32 %v121, %v640
    %v642 = vpop.f32.mrb[0].mxu0
    %v643 = vpop.f32.mrb[0].mxu0
    %v644 = vadd.f32 %v121, %v643
    %v645 = vpop.f32.mrb[0].mxu0
    %646 = vmatprep.mubr.bf16.mxu0 0
    %647 = vmatmul.mubr.bf16.gmra.mrb[0].mxu0 %v198
    %v648 = vpop.f32.mrb[0].mxu0
    %v649 = vadd.f32 %v121, %v648
    %v650 = vpop.f32.mrb[0].mxu0
    %v651 = vpop.f32.mrb[0].mxu0
    %v652 = vadd.f32 %v121, %v651
    %v653 = vpop.f32.mrb[0].mxu0
    %654 = vmatprep.mubr.bf16.mxu0 0
    %655 = vmatmul.mubr.bf16.gmra.mrb[0].mxu0 %v199
    %v656 = vpop.f32.mrb[0].mxu0
    %v657 = vadd.f32 %v121, %v656
    %v658 = vpop.f32.mrb[0].mxu0
    %v659 = vpop.f32.mrb[0].mxu0
    %v660 = vadd.f32 %v121, %v659
    %v661 = vpop.f32.mrb[0].mxu0
    %662 = vmatprep.mubr.bf16.mxu0 0
    %663 = vmatmul.mubr.bf16.gmra.mrb[0].mxu0 %v200
    %v664 = vpop.f32.mrb[0].mxu0
    %v665 = vadd.f32 %v121, %v664
    %v666 = vpop.f32.mrb[0].mxu0
    %v667 = vpop.f32.mrb[0].mxu0
    %v668 = vadd.f32 %v121, %v667
    %v669 = vpop.f32.mrb[0].mxu0
    %670 = vmatprep.mubr.bf16.mxu0 0
    %671 = vmatmul.mubr.bf16.gmra.mrb[0].mxu0 %v201
    %v672 = vpop.f32.mrb[0].mxu0
    %v673 = vadd.f32 %v121, %v672
    %v674 = vpop.f32.mrb[0].mxu0
    %v675 = vpop.f32.mrb[0].mxu0
    %v676 = vadd.f32 %v121, %v675
    %v677 = vpop.f32.mrb[0].mxu0
    %678 = vmatprep.mubr.bf16.mxu0 0
    %679 = vmatmul.mubr.bf16.gmra.mrb[0].mxu0 %v202
    %v680 = vpop.f32.mrb[0].mxu0
    %v681 = vadd.f32 %v121, %v680
    %v682 = vpop.f32.mrb[0].mxu0
    %v683 = vpop.f32.mrb[0].mxu0
    %v684 = vadd.f32 %v121, %v683
    %v685 = vpop.f32.mrb[0].mxu0
    %686 = vmatprep.mubr.bf16.mxu0 0
    %687 = vmatmul.mubr.bf16.gmra.mrb[0].mxu0 %v203
    %v688 = vpop.f32.mrb[0].mxu0
    %v689 = vadd.f32 %v121, %v688
    %v690 = vpop.f32.mrb[0].mxu0
    %v691 = vpop.f32.mrb[0].mxu0
    %v692 = vadd.f32 %v121, %v691
    %v693 = vpop.f32.mrb[0].mxu0
    %694 = vmatprep.mubr.bf16.mxu0 0
    %695 = vmatmul.mubr.bf16.gmra.mrb[0].mxu0 %v204
    %v696 = vpop.f32.mrb[0].mxu0
    %v697 = vadd.f32 %v121, %v696
    %v698 = vpop.f32.mrb[0].mxu0
    %v699 = vpop.f32.mrb[0].mxu0
    %v700 = vadd.f32 %v121, %v699
    %v701 = vpop.f32.mrb[0].mxu0
    %702 = vdwg.mxu0
    %v703 = vpack.c.bf16 %v388, %v384
    %v704 = vpack.c.bf16 %v390, %v386
    %v705 = vpack.c.bf16 %v580, %v577
    %v706 = vpack.c.bf16 %v398, %v394
    %v707 = vpack.c.bf16 %v400, %v396
    %v708 = vpack.c.bf16 %v588, %v585
    %v709 = vpack.c.bf16 %v408, %v404
    %v710 = vpack.c.bf16 %v410, %v406
    %v711 = vpack.c.bf16 %v596, %v593
    %v712 = vpack.c.bf16 %v418, %v414
    %v713 = vpack.c.bf16 %v420, %v416
    %v714 = vpack.c.bf16 %v604, %v601
    %v715 = vpack.c.bf16 %v428, %v424
    %v716 = vpack.c.bf16 %v430, %v426
    %v717 = vpack.c.bf16 %v612, %v609
    %v718 = vpack.c.bf16 %v438, %v434
    %v719 = vpack.c.bf16 %v440, %v436
    %v720 = vpack.c.bf16 %v620, %v617
    %v721 = vpack.c.bf16 %v448, %v444
    %v722 = vpack.c.bf16 %v450, %v446
    %v723 = vpack.c.bf16 %v628, %v625
    %v724 = vpack.c.bf16 %v458, %v454
    %v725 = vpack.c.bf16 %v460, %v456
    %v726 = vpack.c.bf16 %v636, %v633
    %v727 = vpack.c.bf16 %v468, %v464
    %v728 = vpack.c.bf16 %v470, %v466
    %v729 = vpack.c.bf16 %v644, %v641
    %v730 = vpack.c.bf16 %v478, %v474
    %v731 = vpack.c.bf16 %v480, %v476
    %v732 = vpack.c.bf16 %v652, %v649
    %v733 = vpack.c.bf16 %v488, %v484
    %v734 = vpack.c.bf16 %v490, %v486
    %v735 = vpack.c.bf16 %v660, %v657
    %v736 = vpack.c.bf16 %v498, %v494
    %v737 = vpack.c.bf16 %v500, %v496
    %v738 = vpack.c.bf16 %v668, %v665
    %v739 = vpack.c.bf16 %v508, %v504
    %v740 = vpack.c.bf16 %v510, %v506
    %v741 = vpack.c.bf16 %v676, %v673
    %v742 = vpack.c.bf16 %v518, %v514
    %v743 = vpack.c.bf16 %v520, %v516
    %v744 = vpack.c.bf16 %v684, %v681
    %v745 = vpack.c.bf16 %v528, %v524
    %v746 = vpack.c.bf16 %v530, %v526
    %v747 = vpack.c.bf16 %v692, %v689
    %v748 = vpack.c.bf16 %v538, %v534
    %v749 = vpack.c.bf16 %v540, %v536
    %v750 = vpack.c.bf16 %v700, %v697
    %v799 = vunpack.c.l.b16 %v703
    %v800 = vunpack.c.l.b16 %v704
    %v801 = vunpack.c.l.b16 %v705
    %v802 = vunpack.c.h.b16 %v703
    %v803 = vunpack.c.h.b16 %v704
    %v804 = vunpack.c.h.b16 %v705
    %v805 = vunpack.c.l.b16 %v706
    %v806 = vunpack.c.l.b16 %v707
    %v807 = vunpack.c.l.b16 %v708
    %v808 = vunpack.c.h.b16 %v706
    %v809 = vunpack.c.h.b16 %v707
    %v810 = vunpack.c.h.b16 %v708
    %v811 = vunpack.c.l.b16 %v709
    %v812 = vunpack.c.l.b16 %v710
    %v813 = vunpack.c.l.b16 %v711
    %v814 = vunpack.c.h.b16 %v709
    %v815 = vunpack.c.h.b16 %v710
    %v816 = vunpack.c.h.b16 %v711
    %v817 = vunpack.c.l.b16 %v712
    %v818 = vunpack.c.l.b16 %v713
    %v819 = vunpack.c.l.b16 %v714
    %v820 = vunpack.c.h.b16 %v712
    %v821 = vunpack.c.h.b16 %v713
    %v822 = vunpack.c.h.b16 %v714
    %v823 = vunpack.c.l.b16 %v715
    %v824 = vunpack.c.l.b16 %v716
    %v825 = vunpack.c.l.b16 %v717
    %v826 = vunpack.c.h.b16 %v715
    %v827 = vunpack.c.h.b16 %v716
    %v828 = vunpack.c.h.b16 %v717
    %v829 = vunpack.c.l.b16 %v718
    %v830 = vunpack.c.l.b16 %v719
    %v831 = vunpack.c.l.b16 %v720
    %v832 = vunpack.c.h.b16 %v718
    %v833 = vunpack.c.h.b16 %v719
    %v834 = vunpack.c.h.b16 %v720
    %v835 = vunpack.c.l.b16 %v721
    %v836 = vunpack.c.l.b16 %v722
    %v837 = vunpack.c.l.b16 %v723
    %v838 = vunpack.c.h.b16 %v721
    %v839 = vunpack.c.h.b16 %v722
    %v840 = vunpack.c.h.b16 %v723
    %v841 = vunpack.c.l.b16 %v724
    %v842 = vunpack.c.l.b16 %v725
    %v843 = vunpack.c.l.b16 %v726
    %v844 = vunpack.c.h.b16 %v724
    %v845 = vunpack.c.h.b16 %v725
    %v846 = vunpack.c.h.b16 %v726
    %v847 = vunpack.c.l.b16 %v727
    %v848 = vunpack.c.l.b16 %v728
    %v849 = vunpack.c.l.b16 %v729
    %v850 = vunpack.c.h.b16 %v727
    %v851 = vunpack.c.h.b16 %v728
    %v852 = vunpack.c.h.b16 %v729
    %v853 = vunpack.c.l.b16 %v730
    %v854 = vunpack.c.l.b16 %v731
    %v855 = vunpack.c.l.b16 %v732
    %v856 = vunpack.c.h.b16 %v730
    %v857 = vunpack.c.h.b16 %v731
    %v858 = vunpack.c.h.b16 %v732
    %v859 = vunpack.c.l.b16 %v733
    %v860 = vunpack.c.l.b16 %v734
    %v861 = vunpack.c.l.b16 %v735
    %v862 = vunpack.c.h.b16 %v733
    %v863 = vunpack.c.h.b16 %v734
    %v864 = vunpack.c.h.b16 %v735
    %v865 = vunpack.c.l.b16 %v736
    %v866 = vunpack.c.l.b16 %v737
    %v867 = vunpack.c.l.b16 %v738
    %v868 = vunpack.c.h.b16 %v736
    %v869 = vunpack.c.h.b16 %v737
    %v870 = vunpack.c.h.b16 %v738
    %v871 = vunpack.c.l.b16 %v739
    %v872 = vunpack.c.l.b16 %v740
    %v873 = vunpack.c.l.b16 %v741
    %v874 = vunpack.c.h.b16 %v739
    %v875 = vunpack.c.h.b16 %v740
    %v876 = vunpack.c.h.b16 %v741
    %v877 = vunpack.c.l.b16 %v742
    %v878 = vunpack.c.l.b16 %v743
    %v879 = vunpack.c.l.b16 %v744
    %v880 = vunpack.c.h.b16 %v742
    %v881 = vunpack.c.h.b16 %v743
    %v882 = vunpack.c.h.b16 %v744
    %v883 = vunpack.c.l.b16 %v745
    %v884 = vunpack.c.l.b16 %v746
    %v885 = vunpack.c.l.b16 %v747
    %v886 = vunpack.c.h.b16 %v745
    %v887 = vunpack.c.h.b16 %v746
    %v888 = vunpack.c.h.b16 %v747
    %v889 = vunpack.c.l.b16 %v748
    %v890 = vunpack.c.l.b16 %v749
    %v891 = vunpack.c.l.b16 %v750
    %v892 = vunpack.c.h.b16 %v748
    %v893 = vunpack.c.h.b16 %v749
    %v894 = vunpack.c.h.b16 %v750
    %v895 = vpack.c.b16 %v800, %v799
    %v896 = vpack.c.b16 %v801, %v801
    %v897 = vpack.c.b16 %v803, %v802
    %v898 = vpack.c.b16 %v804, %v804
    %v899 = vpack.c.b16 %v806, %v805
    %v900 = vpack.c.b16 %v807, %v807
    %v901 = vpack.c.b16 %v809, %v808
    %v902 = vpack.c.b16 %v810, %v810
    %v903 = vpack.c.b16 %v812, %v811
    %v904 = vpack.c.b16 %v813, %v813
    %v905 = vpack.c.b16 %v815, %v814
    %v906 = vpack.c.b16 %v816, %v816
    %v907 = vpack.c.b16 %v818, %v817
    %v908 = vpack.c.b16 %v819, %v819
    %v909 = vpack.c.b16 %v821, %v820
    %v910 = vpack.c.b16 %v822, %v822
    %v911 = vpack.c.b16 %v824, %v823
    %v912 = vpack.c.b16 %v825, %v825
    %v913 = vpack.c.b16 %v827, %v826
    %v914 = vpack.c.b16 %v828, %v828
    %v915 = vpack.c.b16 %v830, %v829
    %v916 = vpack.c.b16 %v831, %v831
    %v917 = vpack.c.b16 %v833, %v832
    %v918 = vpack.c.b16 %v834, %v834
    %v919 = vpack.c.b16 %v836, %v835
    %v920 = vpack.c.b16 %v837, %v837
    %v921 = vpack.c.b16 %v839, %v838
    %v922 = vpack.c.b16 %v840, %v840
    %v923 = vpack.c.b16 %v842, %v841
    %v924 = vpack.c.b16 %v843, %v843
    %v925 = vpack.c.b16 %v845, %v844
    %v926 = vpack.c.b16 %v846, %v846
    %v927 = vpack.c.b16 %v848, %v847
    %v928 = vpack.c.b16 %v849, %v849
    %v929 = vpack.c.b16 %v851, %v850
    %v930 = vpack.c.b16 %v852, %v852
    %v931 = vpack.c.b16 %v854, %v853
    %v932 = vpack.c.b16 %v855, %v855
    %v933 = vpack.c.b16 %v857, %v856
    %v934 = vpack.c.b16 %v858, %v858
    %v935 = vpack.c.b16 %v860, %v859
    %v936 = vpack.c.b16 %v861, %v861
    %v937 = vpack.c.b16 %v863, %v862
    %v938 = vpack.c.b16 %v864, %v864
    %v939 = vpack.c.b16 %v866, %v865
    %v940 = vpack.c.b16 %v867, %v867
    %v941 = vpack.c.b16 %v869, %v868
    %v942 = vpack.c.b16 %v870, %v870
    %v943 = vpack.c.b16 %v872, %v871
    %v944 = vpack.c.b16 %v873, %v873
    %v945 = vpack.c.b16 %v875, %v874
    %v946 = vpack.c.b16 %v876, %v876
    %v947 = vpack.c.b16 %v878, %v877
    %v948 = vpack.c.b16 %v879, %v879
    %v949 = vpack.c.b16 %v881, %v880
    %v950 = vpack.c.b16 %v882, %v882
    %v951 = vpack.c.b16 %v884, %v883
    %v952 = vpack.c.b16 %v885, %v885
    %v953 = vpack.c.b16 %v887, %v886
    %v954 = vpack.c.b16 %v888, %v888
    %v955 = vpack.c.b16 %v890, %v889
    %v956 = vpack.c.b16 %v891, %v891
    %v957 = vpack.c.b16 %v893, %v892
    %v958 = vpack.c.b16 %v894, %v894
    %1023 = vst [vmem:[#allocation7] sm:$0xff] %v895
    %1024 = vst [vmem:[#allocation7 + $0x8] sm:$0xf] %v896
    %1025 = vst [vmem:[#allocation7 + $0xc] sm:$0xff] %v897
    %1026 = vst [vmem:[#allocation7 + $0x14] sm:$0xf] %v898
    %1027 = vst [vmem:[#allocation7 + $0x18] sm:$0xff] %v899
    %1028 = vst [vmem:[#allocation7 + $0x20] sm:$0xf] %v900
    %1029 = vst [vmem:[#allocation7 + $0x24] sm:$0xff] %v901
    %1030 = vst [vmem:[#allocation7 + $0x2c] sm:$0xf] %v902
    %1031 = vst [vmem:[#allocation7 + $0x30] sm:$0xff] %v903
    %1032 = vst [vmem:[#allocation7 + $0x38] sm:$0xf] %v904
    %1033 = vst [vmem:[#allocation7 + $0x3c] sm:$0xff] %v905
    %1034 = vst [vmem:[#allocation7 + $0x44] sm:$0xf] %v906
    %1035 = vst [vmem:[#allocation7 + $0x48] sm:$0xff] %v907
    %1036 = vst [vmem:[#allocation7 + $0x50] sm:$0xf] %v908
    %1037 = vst [vmem:[#allocation7 + $0x54] sm:$0xff] %v909
    %1038 = vst [vmem:[#allocation7 + $0x5c] sm:$0xf] %v910
    %1039 = vst [vmem:[#allocation7 + $0x60] sm:$0xff] %v911
    %1040 = vst [vmem:[#allocation7 + $0x68] sm:$0xf] %v912
    %1041 = vst [vmem:[#allocation7 + $0x6c] sm:$0xff] %v913
    %1042 = vst [vmem:[#allocation7 + $0x74] sm:$0xf] %v914
    %1043 = vst [vmem:[#allocation7 + $0x78] sm:$0xff] %v915
    %1044 = vst [vmem:[#allocation7 + $0x80] sm:$0xf] %v916
    %1045 = vst [vmem:[#allocation7 + $0x84] sm:$0xff] %v917
    %1046 = vst [vmem:[#allocation7 + $0x8c] sm:$0xf] %v918
    %1047 = vst [vmem:[#allocation7 + $0x90] sm:$0xff] %v919
    %1048 = vst [vmem:[#allocation7 + $0x98] sm:$0xf] %v920
    %1049 = vst [vmem:[#allocation7 + $0x9c] sm:$0xff] %v921
    %1050 = vst [vmem:[#allocation7 + $0xa4] sm:$0xf] %v922
    %1051 = vst [vmem:[#allocation7 + $0xa8] sm:$0xff] %v923
    %1052 = vst [vmem:[#allocation7 + $0xb0] sm:$0xf] %v924
    %1053 = vst [vmem:[#allocation7 + $0xb4] sm:$0xff] %v925
    %1054 = vst [vmem:[#allocation7 + $0xbc] sm:$0xf] %v926
    %1055 = vst [vmem:[#allocation7 + $0xc0] sm:$0xff] %v927
    %1056 = vst [vmem:[#allocation7 + $0xc8] sm:$0xf] %v928
    %1057 = vst [vmem:[#allocation7 + $0xcc] sm:$0xff] %v929
    %1058 = vst [vmem:[#allocation7 + $0xd4] sm:$0xf] %v930
    %1059 = vst [vmem:[#allocation7 + $0xd8] sm:$0xff] %v931
    %1060 = vst [vmem:[#allocation7 + $0xe0] sm:$0xf] %v932
    %1061 = vst [vmem:[#allocation7 + $0xe4] sm:$0xff] %v933
    %1062 = vst [vmem:[#allocation7 + $0xec] sm:$0xf] %v934
    %1063 = vst [vmem:[#allocation7 + $0xf0] sm:$0xff] %v935
    %1064 = vst [vmem:[#allocation7 + $0xf8] sm:$0xf] %v936
    %1065 = vst [vmem:[#allocation7 + $0xfc] sm:$0xff] %v937
    %1066 = vst [vmem:[#allocation7 + $0x104] sm:$0xf] %v938
    %1067 = vst [vmem:[#allocation7 + $0x108] sm:$0xff] %v939
    %1068 = vst [vmem:[#allocation7 + $0x110] sm:$0xf] %v940
    %1069 = vst [vmem:[#allocation7 + $0x114] sm:$0xff] %v941
    %1070 = vst [vmem:[#allocation7 + $0x11c] sm:$0xf] %v942
    %1071 = vst [vmem:[#allocation7 + $0x120] sm:$0xff] %v943
    %1072 = vst [vmem:[#allocation7 + $0x128] sm:$0xf] %v944
    %1073 = vst [vmem:[#allocation7 + $0x12c] sm:$0xff] %v945
    %1074 = vst [vmem:[#allocation7 + $0x134] sm:$0xf] %v946
    %1075 = vst [vmem:[#allocation7 + $0x138] sm:$0xff] %v947
    %1076 = vst [vmem:[#allocation7 + $0x140] sm:$0xf] %v948
    %1077 = vst [vmem:[#allocation7 + $0x144] sm:$0xff] %v949
    %1078 = vst [vmem:[#allocation7 + $0x14c] sm:$0xf] %v950
    %1079 = vst [vmem:[#allocation7 + $0x150] sm:$0xff] %v951
    %1080 = vst [vmem:[#allocation7 + $0x158] sm:$0xf] %v952
    %1081 = vst [vmem:[#allocation7 + $0x15c] sm:$0xff] %v953
    %1082 = vst [vmem:[#allocation7 + $0x164] sm:$0xf] %v954
    %1083 = vst [vmem:[#allocation7 + $0x168] sm:$0xff] %v955
    %1084 = vst [vmem:[#allocation7 + $0x170] sm:$0xf] %v956
    %1085 = vst [vmem:[#allocation7 + $0x174] sm:$0xff] %v957
    %1086 = vst [vmem:[#allocation7 + $0x17c] sm:$0xf] %v958
    // Predicated region
    $region22: #{tpu_custom_call.1} parent=1 // pred_check
      _
    $region23: #{tpu_custom_call.1} parent=1 // pred_check_branch
      %1088 = sbr.rel (0) target = $region25
    $region24: #{tpu_custom_call.1} parent=1 // pred_region
      %s1090 = ssub.s32 6144, 6144
      %1091 = vsyncadd [#allocation4], %s1090
      %s1092 = sshll.u32 [#allocation7], 4
      %s1093 = int_to_ptr.vmem [resolvable:$true] %s1092
      %1098 = dma.vmem_to_hbm [thread:$0]  %s1093, 6144, %s3, [#allocation4], 192, 192, 12
    $region25: #{tpu_custom_call.1} parent=1 // pred_fallthru
      _
    // Predicated region
    $region26: #{tpu_custom_call.1} parent=1 // pred_check
      _
    $region27: #{tpu_custom_call.1} parent=1 // pred_check_branch
      %1100 = sbr.rel (0) target = $region29
    $region28: #{tpu_custom_call.1} parent=1 // pred_region
      %1101 = dma.done [#allocation4], 6144
    $region29: #{tpu_custom_call.1} parent=1 // pred_fallthru
      _
    %1102 = vsyncpa [#allocation3], 1
    %1103 = vsyncpa [#allocation6], 1
    %1104 = vsyncpa [#allocation4], 1

</llo_original>
